<compile_context>
chip_gen: v5e
topology: v5e:2x2
jax: 0.10.0
libtpu: 0.0.40
codegen_flags: <defaults>
</compile_context>

<pallas_src>
import math

import jax
import jax.numpy as jnp
from jax.experimental import pallas as pl
from jax.experimental.pallas import tpu as pltpu


_LANE_WIDTH = 512      # lane-dense width of the flattened slab (multiple of 128)
_MAX_TILE_ROWS = 256   # rows of the flattened slab per grid tile (multiple of 8)


def _ttfs_kernel(x_ref, o_ref, xs_ref):
    """One grid point = (row-tile i, time-step t).

    x_ref : (TM, TN) f32 input tile (resident in VMEM across the whole t loop)
    o_ref : (TM, TN) f32 t-th time slice of the output for this tile
    xs_ref: (TM, TN) f32 scratch holding x*step, computed once at t == 0
    """
    t = pl.program_id(1)
    step_f = jnp.float32(pl.num_programs(1))

    # Hoist the step-invariant product x*step: compute once per input tile.
    @pl.when(t == 0)
    def _():
        xs_ref[...] = x_ref[...] * step_f

    t_f = t.astype(jnp.float32)
    upper = step_f - t_f            # step - i
    lower = upper - 1.0             # step - i - 1
    xs = xs_ref[...]
    mask = (xs <= upper) & (xs > lower)
    val = 1.0 / (t_f + 1.0)         # 1 / (i + 1), exact division (matches torch)
    o_ref[...] = jnp.where(mask, val, jnp.float32(0.0))


def ttfs_encode(x, step):
    """TTFS encode. x: any-shape float array. Returns (step,) + x.shape, f32."""
    orig_shape = x.shape
    L = math.prod(orig_shape)

    TN = _LANE_WIDTH
    rows = -(-L // TN)                                   # ceil(L / TN)
    TM = min(_MAX_TILE_ROWS, ((rows + 7) // 8) * 8)      # multiple of 8
    rows_pad = ((rows + TM - 1) // TM) * TM              # pad rows to tile size
    L_pad = rows_pad * TN

    x_flat = x.reshape(-1).astype(jnp.float32)
    if L_pad != L:
        x_flat = jnp.pad(x_flat, (0, L_pad - L))         # padded elems never fire / sliced off
    x2d = x_flat.reshape(rows_pad, TN)

    grid = (rows_pad // TM, step)

    cost = pl.CostEstimate(
        flops=4 * step * L_pad,
        transcendentals=0,
        bytes_accessed=4 * (L_pad + step * L_pad),
    )

    out = pl.pallas_call(
        _ttfs_kernel,
        out_shape=jax.ShapeDtypeStruct((step, rows_pad, TN), jnp.float32),
        grid_spec=pltpu.PrefetchScalarGridSpec(
            num_scalar_prefetch=0,
            grid=grid,
            in_specs=[pl.BlockSpec((TM, TN), lambda i, t: (i, 0))],
            out_specs=pl.BlockSpec((None, TM, TN), lambda i, t: (t, i, 0)),
            scratch_shapes=[pltpu.VMEM((TM, TN), jnp.float32)],
        ),
        compiler_params=pltpu.CompilerParams(
            dimension_semantics=("parallel", "arbitrary"),
            vmem_limit_bytes=32 * 1024 * 1024,
        ),
        cost_estimate=cost,
    )(x2d)

    return out.reshape(step, L_pad)[:, :L].reshape((step,) + orig_shape)


class EncoderPallas:
    """Pallas equivalent of braincog Encoder(step, encode_type='ttfs') defaults."""

    def __init__(self, step, encode_type="ttfs"):
        assert encode_type == "ttfs", "only the default 'ttfs' path is implemented"
        # TODO(synk): 'rate'/'phase'/'direct'/'auto' encode types and the
        # deletion_prob / shift_var noise paths are not exercised by the
        # default forward and are not ported.
        self.step = step

    def __call__(self, inputs):
        if inputs.ndim == 5:
            # (b, t, c, h, w) -> (t, b, c, h, w): pure layout permute
            return jnp.transpose(inputs, (1, 0, 2, 3, 4))
        return ttfs_encode(inputs, self.step)


def _ttfs_reference(x, step):
    x = x.astype(jnp.float32)
    ts = jnp.arange(step, dtype=jnp.float32).reshape((step,) + (1,) * x.ndim)
    xs = x[None] * step
    mask = (xs <= (step - ts)) & (xs > (step - ts - 1.0))
    return jnp.where(mask, 1.0 / (ts + 1.0), 0.0)


if __name__ == "__main__":
    step = 8
    B, C, H, W = 2, 4, 16, 16
    key = jax.random.PRNGKey(0)
    x = jax.random.uniform(key, (B, C, H, W), dtype=jnp.float32)

    enc = EncoderPallas(step, encode_type="ttfs")
    out = jax.block_until_ready(enc(x))

    assert out.shape == (step, B, C, H, W)
    ref = _ttfs_reference(x, step)
    assert jnp.allclose(out, ref), "mismatch vs reference ttfs encoding"

    # Exercise the 5-D pass-through path: (b, t, c, h, w) -> (t, b, c, h, w)
    x5 = jax.random.uniform(jax.random.PRNGKey(1), (B, step, C, H, W), jnp.float32)
    out5 = jax.block_until_ready(enc(x5))
    assert out5.shape == (step, B, C, H, W)
    assert jnp.allclose(out5, jnp.transpose(x5, (1, 0, 2, 3, 4)))

    print("KERNEL_OK")
</pallas_src>

<mosaic_0001>
module attributes {stable_mosaic.version = 11 : i64} {
  func.func @_ttfs_kernel(%arg0: i32, %arg1: i32, %arg2: memref<8x512xf32, #tpu.memory_space<vmem>>, %arg3: memref<1x8x512xf32, #tpu.memory_space<vmem>>, %arg4: memref<8x512xf32, #tpu.memory_space<vmem>>) attributes {dimension_semantics = [#tpu.dimension_semantics<parallel>, #tpu.dimension_semantics<arbitrary>], iteration_bounds = array<i64: 1, 8>, scalar_prefetch = 0 : i64, scratch_operands = 1 : i64, tpu.core_type = #tpu.core_type<tc>, window_params = [{transform_indices = @transform_0, window_bounds = array<i64: 8, 512>}, {transform_indices = @transform_1, window_bounds = array<i64: 1, 8, 512>}]} {
    %c0_i32 = arith.constant 0 : i32
    %0 = arith.cmpi eq, %arg1, %c0_i32 : i32
    %1 = arith.extui %0 : i1 to i32
    %cst = arith.constant 8.000000e+00 : f32
    %c0_i32_0 = arith.constant 0 : i32
    %2 = arith.cmpi ne, %1, %c0_i32_0 : i32
    scf.if %2 {
      %c0_10 = arith.constant 0 : index
      %c0_11 = arith.constant 0 : index
      %20 = vector.load %arg2[%c0_10, %c0_11] : memref<8x512xf32, #tpu.memory_space<vmem>>, vector<8x512xf32>
      %21 = vector.broadcast %cst : f32 to vector<8x512xf32>
      %22 = arith.mulf %20, %21 : vector<8x512xf32>
      %c0_12 = arith.constant 0 : index
      %c0_13 = arith.constant 0 : index
      %23 = vector.load %arg4[%c0_12, %c0_13] : memref<8x512xf32, #tpu.memory_space<vmem>>, vector<8x512xf32>
      tpu.vector_store %arg4[%c0_12, %c0_13], %22 {strides = array<i32>} : memref<8x512xf32, #tpu.memory_space<vmem>>, vector<8x512xf32>,
    } else {
    }
    %3 = arith.sitofp %arg1 : i32 to f32
    %cst_1 = arith.constant 8.000000e+00 : f32
    %4 = arith.subf %cst_1, %3 : f32
    %cst_2 = arith.constant 1.000000e+00 : f32
    %5 = arith.subf %4, %cst_2 : f32
    %c0 = arith.constant 0 : index
    %c0_3 = arith.constant 0 : index
    %6 = vector.load %arg4[%c0, %c0_3] : memref<8x512xf32, #tpu.memory_space<vmem>>, vector<8x512xf32>
    %7 = vector.broadcast %4 : f32 to vector<8x512xf32>
    %8 = arith.cmpf ole, %6, %7 : vector<8x512xf32>
    %9 = vector.broadcast %5 : f32 to vector<8x512xf32>
    %10 = arith.cmpf ogt, %6, %9 : vector<8x512xf32>
    %11 = arith.andi %8, %10 : vector<8x512xi1>
    %cst_4 = arith.constant 1.000000e+00 : f32
    %12 = arith.addf %3, %cst_4 : f32
    %cst_5 = arith.constant 1.000000e+00 : f32
    %13 = arith.divf %cst_5, %12 : f32
    %cst_6 = arith.constant 0.000000e+00 : f32
    %14 = vector.broadcast %13 : f32 to vector<8x512xf32>
    %15 = vector.broadcast %cst_6 : f32 to vector<8x512xf32>
    %16 = arith.select %11, %14, %15 : vector<8x512xi1>, vector<8x512xf32>
    %c0_7 = arith.constant 0 : index
    %c0_8 = arith.constant 0 : index
    %c0_9 = arith.constant 0 : index
    %17 = vector.load %arg3[%c0_7, %c0_8, %c0_9] : memref<1x8x512xf32, #tpu.memory_space<vmem>>, vector<1x8x512xf32>
    %18 = vector.shape_cast %17 : vector<1x8x512xf32> to vector<8x512xf32>
    %19 = vector.shape_cast %16 : vector<8x512xf32> to vector<1x8x512xf32>
    tpu.vector_store %arg3[%c0_7, %c0_8, %c0_9], %19 {strides = array<i32>} : memref<1x8x512xf32, #tpu.memory_space<vmem>>, vector<1x8x512xf32>,
    return
  }
  func.func @transform_0(%arg0: i32, %arg1: i32) -> (i32, i32) {
    %c0_i32 = arith.constant 0 : i32
    %c0_i32_0 = arith.constant 0 : i32
    return %arg0, %c0_i32 : i32, i32
  }
  func.func @transform_1(%arg0: i32, %arg1: i32) -> (i32, i32, i32) {
    %c0_i32 = arith.constant 0 : i32
    %c0_i32_0 = arith.constant 0 : i32
    return %arg1, %arg0, %c0_i32 : i32, i32, i32
  }
}

</mosaic_0001>

<llo_original>
// kernel: tpu_custom_call.1
$region0: #{tpu_custom_call.1}
  #allocation0 [shape = 'u32[]', space=smem, size = 0x4, offset = 0x4, fixed_abs, tag = 'smem constant byte address 0x4 - core index']
  #allocation1 [shape = 'u32[72,128]{1,0:T(1,128)}', space=vmem, size = 0x9000, scoped, tag = 'internal scratch']
  #allocation2 [shape = 'f32[8,512]{1,0:T(8,128)}', space=vmem, size = 0x4000, scoped, tag = 'scratch operand']
  %s0 = inlined_call_operand.hbm [shape: f32[8,512], index: 0, kind: input, shape index: {}]
  %s1 = inlined_call_operand.hbm [shape: f32[8,8,512], index: 1, kind: output, shape index: {}]
  %s2 = sld [smem:[#allocation0]]
  $region45: #{tpu_custom_call.1} parent=0
    _
  %s4 = ssub.s32 1, %s2
  %s5 = scalar_select 0, %s4, %s2
  $region1: #{tpu_custom_call.1} parent=0
    #allocation3 [shape = 'u8[16384]{0}', space=vmem, size = 0x4000, scoped, tag = 'input window, operand 0, single buffered']
    #allocation4 [shape = 's32[2]{0}', space=sflag, size = 0x8, scoped, tag = 'scoped memory for tpu_custom_call.1']
    #allocation5 [shape = 's32[2]{0}', space=sflag, size = 0x8, scoped, tag = 'scoped memory for tpu_custom_call.1']
    #allocation6 [shape = 'u8[32768]{0}', space=vmem, size = 0x8000, scoped, tag = 'output window, operand 0']
    %6 = vsyncpa [#allocation4], 0
    %7 = vsyncpa [#allocation5], 0
    %s8 = scalar_lea.sflag [#allocation5], 1
    %9 = vsyncpa %s8, 0
    loop: start=0, step=1, limit=10
    $region2: #{tpu_custom_call.1} parent=1 // loop_pre_header
      _
    $region3: #{tpu_custom_call.1} parent=1 // loop_header
      %s11 = sphi 0, %s15
      %p12 = scmp.ge.s32.totalorder %s11, 10
      %s18 = sphi 0, %s30
      %s19 = sphi 0, %s26
      %s20 = sphi 0, %s18
      %s21 = sphi 0, %s19
      %s22 = sphi 0, %s20
      %s23 = sphi 0, %s21
      %s33 = sphi 0, %s35
      %s36 = sphi 0, %s33
      %s37 = sphi 0, %s36
      %s53 = sphi 0, %s37
      %s61 = sphi 0, %s63
      %s64 = sphi 0, %s61
      %s65 = sphi 0, %s64
      %s81 = sphi 0, %s65
    $region4: #{tpu_custom_call.1} parent=1 // loop_header_branch
      %14 = sbr.rel (%p12) target = $region8
    $region5: #{tpu_custom_call.1} parent=1 // loop_body
      %s16 = ssub.s32 %s11, 1
      %s17 = ssub.s32 %s11, 2
      %s24 = sadd.s32 1, %s19
      %p25 = scmp.ge.s32.totalorder %s24, 8
      %s26 = scalar_select %p25, 0, %s24
      %s27 = sadd.s32 1, %s18
      %s28 = scalar_select %p25, %s27, %s18
      %p29 = scmp.ge.s32.totalorder %s28, 1
      %s30 = scalar_select %p29, 0, %s28
      %s31 = ssub.s32 %s18, %s30
      %p32 = scmp.eq.s32.totalorder %s31, 0
      %s34 = sadd.s32 %s33, 1
      %s35 = scalar_select %p32, %s33, %s34
      %p38 = pneg %p32
      %p39 = scmp.eq.s32.totalorder %s11, 7
      %p40 = por %p38, %p39
      %p41 = scmp.ne.s32.totalorder %s33, %s36
      %p42 = scmp.eq.s32.totalorder %s11, 0
      %p43 = por %p41, %p42
      %p44 = scmp.ne.s32.totalorder %s33, %s36
      %p45 = scmp.eq.s32.totalorder %s16, 7
      %p46 = por %p44, %p45
      %p47 = scmp.ne.s32.totalorder %s36, %s37
      %p48 = scmp.eq.s32.totalorder %s16, 0
      %p49 = por %p47, %p48
      %p50 = scmp.ne.s32.totalorder %s36, %s37
      %p51 = scmp.eq.s32.totalorder %s17, 7
      %p52 = por %p50, %p51
      %p54 = scmp.ne.s32.totalorder %s37, %s53
      %p55 = scmp.eq.s32.totalorder %s17, 0
      %p56 = por %p54, %p55
      %s57 = ssub.s32 %s19, %s26
      %s58 = ssub.s32 %s18, %s30
      %s59 = sor.u32 %s57, %s58
      %p60 = scmp.eq.s32.totalorder %s59, 0
      %s62 = sadd.s32 %s61, 1
      %s63 = scalar_select %p60, %s61, %s62
      %p66 = pneg %p60
      %p67 = scmp.eq.s32.totalorder %s11, 7
      %p68 = por %p66, %p67
      %p69 = scmp.ne.s32.totalorder %s61, %s64
      %p70 = scmp.eq.s32.totalorder %s11, 0
      %p71 = por %p69, %p70
      %p72 = scmp.ne.s32.totalorder %s61, %s64
      %p73 = scmp.eq.s32.totalorder %s16, 7
      %p74 = por %p72, %p73
      %p75 = scmp.ne.s32.totalorder %s64, %s65
      %p76 = scmp.eq.s32.totalorder %s16, 0
      %p77 = por %p75, %p76
      %p78 = scmp.ne.s32.totalorder %s64, %s65
      %p79 = scmp.eq.s32.totalorder %s17, 7
      %p80 = por %p78, %p79
      %p82 = scmp.ne.s32.totalorder %s65, %s81
      %p83 = scmp.eq.s32.totalorder %s17, 0
      %p84 = por %p82, %p83
      %p85 = scmp.le.s32.totalorder 1, %s11
      %p86 = scmp.lt.s32.totalorder %s11, 9
      %p87 = pnand %p85, %p86
      %p88 = pneg %p87
      // Predicated region
      $region9: #{tpu_custom_call.1} parent=5 // pred_check
        _
      $region10: #{tpu_custom_call.1} parent=5 // pred_check_branch
        %90 = sbr.rel (%p87) target = $region12
      $region11: #{tpu_custom_call.1} parent=5 // pred_region
        %s91 = ssub.s32 %s11, 1
        // Predicated region
        $region13: #{tpu_custom_call.1} parent=11 // pred_check
          %p92 = pneg %p49
        $region14: #{tpu_custom_call.1} parent=11 // pred_check_branch
          %94 = sbr.rel (%p92) target = $region16
        $region15: #{tpu_custom_call.1} parent=11 // pred_region
          %96 = vsyncadd [#allocation4], 0
          %s97 = smul.addr %s20, 4
          %s98 = smul.addr %s97, 8
          %s99 = scalar_lea.hbm %s0, %s98
          %s101 = sshll.u32 %s99, 4
          %s102 = int_to_ptr.hbm [resolvable:$true] %s101
          %s103 = sshll.u32 [#allocation3], 4
          %s104 = int_to_ptr.vmem [resolvable:$true] %s103
          %106 = dma.hbm_to_vmem [thread:$0]  %s102, 512, %s104, [#allocation4]
        $region16: #{tpu_custom_call.1} parent=11 // pred_fallthru
          _
      $region12: #{tpu_custom_call.1} parent=5 // pred_fallthru
        _
      %p107 = scmp.lt.s32.totalorder %s11, 8
      // Predicated region
      $region17: #{tpu_custom_call.1} parent=5 // pred_check
        %p108 = pneg %p107
      $region18: #{tpu_custom_call.1} parent=5 // pred_check_branch
        %110 = sbr.rel (%p108) target = $region20
      $region19: #{tpu_custom_call.1} parent=5 // pred_region
        _
      $region20: #{tpu_custom_call.1} parent=5 // pred_fallthru
        _
      %p111 = scmp.le.s32.totalorder 1, %s11
      %p112 = scmp.lt.s32.totalorder %s11, 9
      %p113 = pnand %p111, %p112
      %p114 = pneg %p113
      // Predicated region
      $region21: #{tpu_custom_call.1} parent=5 // pred_check
        _
      $region22: #{tpu_custom_call.1} parent=5 // pred_check_branch
        %116 = sbr.rel (%p113) target = $region24
      $region23: #{tpu_custom_call.1} parent=5 // pred_region
        %s117 = ssub.s32 %s11, 1
        // Predicated region
        $region25: #{tpu_custom_call.1} parent=23 // pred_check
          %p118 = pneg %p49
        $region26: #{tpu_custom_call.1} parent=23 // pred_check_branch
          %120 = sbr.rel (%p118) target = $region28
        $region27: #{tpu_custom_call.1} parent=23 // pred_region
          %122 = dma.done [#allocation4], 512
        $region28: #{tpu_custom_call.1} parent=23 // pred_fallthru
          _
        %p123 = pneg %p49
        %p124 = pneg %p46
        %p125 = pneg %p77
        %p126 = pneg %p74
        %s127 = sand.u32 %s64, 1
        %s128 = scalar_lea.sflag [#allocation5], %s127
        %s129 = sand.u32 %s64, 1
        %s130 = smul.addr %s129, 32
        %s131 = scalar_lea.vmem [#allocation6], %s130
        %p132 = scmp.eq.s32.totalorder %s21, 0
        // Predicated region
        $region29: #{tpu_custom_call.1} parent=23 // pred_check
          %p133 = pneg %p132
        $region30: #{tpu_custom_call.1} parent=23 // pred_check_branch
          %135 = sbr.rel (%p133) target = $region32
        $region31: #{tpu_custom_call.1} parent=23 // pred_region
          %v136 = vld [vmem:[#allocation3] sm:$0xff]
          %v137 = vld [vmem:[#allocation3 + $0x8] sm:$0xff]
          %v138 = vld [vmem:[#allocation3 + $0x10] sm:$0xff]
          %v139 = vld [vmem:[#allocation3 + $0x18] sm:$0xff]
          %v140 = vmul.f32 %v136, 8.0
          %v141 = vmul.f32 %v137, 8.0
          %v142 = vmul.f32 %v138, 8.0
          %v143 = vmul.f32 %v139, 8.0
          %144 = vst [vmem:[#allocation2] sm:$0xff] %v140
          %145 = vst [vmem:[#allocation2 + $0x8] sm:$0xff] %v141
          %146 = vst [vmem:[#allocation2 + $0x10] sm:$0xff] %v142
          %147 = vst [vmem:[#allocation2 + $0x18] sm:$0xff] %v143
        $region32: #{tpu_custom_call.1} parent=23 // pred_fallthru
          _
        %s148 = scvt.s32.f32 %s21
        %s149 = ssub.f32 8.0, %s148
        %s150 = ssub.f32 %s149, 1.0
        %v151 = vld [vmem:[#allocation2] sm:$0xff]
        %v152 = vld [vmem:[#allocation2 + $0x8] sm:$0xff]
        %v153 = vld [vmem:[#allocation2 + $0x10] sm:$0xff]
        %v154 = vld [vmem:[#allocation2 + $0x18] sm:$0xff]
        %v155 = vstv %s149
        %vm156 = vcmp.le.f32.partialorder %v151, %v155
        %vm157 = vcmp.le.f32.partialorder %v152, %v155
        %vm158 = vcmp.le.f32.partialorder %v153, %v155
        %vm159 = vcmp.le.f32.partialorder %v154, %v155
        %v160 = vstv %s150
        %vm161 = vcmp.gt.f32.partialorder %v151, %v160
        %vm162 = vcmp.gt.f32.partialorder %v152, %v160
        %vm163 = vcmp.gt.f32.partialorder %v153, %v160
        %vm164 = vcmp.gt.f32.partialorder %v154, %v160
        %vm165 = vmand %vm156, %vm161
        %vm166 = vmand %vm157, %vm162
        %vm167 = vmand %vm158, %vm163
        %vm168 = vmand %vm159, %vm164
        %s169 = sadd.f32 %s148, 1.0
        %v170 = vstv %s169
        %v171 = vrcp.pop %v170
        %v172 = vmul.f32 %v170, %v171
        %v173 = vsub.f32 1.0, %v172
        %v174 = vmul.f32 %v171, %v173
        %v175 = vadd.f32 %v171, %v174
        %vm176 = vweird.f32 %v170
        %vm177 = vweird.f32 %v171
        %vm178 = vmor %vm176, %vm177
        %v179 = vsel %vm178, %v171, %v175
        %v180 = vand.u32 2147483647, %v170
        %vm181 = vcmp.eq.f32.partialorder %v180, 8.507059e+37
        %v182 = vand.u32 %v170, 2147483648
        %v183 = vor.u32 1.1754944e-38, %v182
        %v184 = vsel %vm181, %v183, %v179
        %s185 = vtos %v184
        %v186 = vstv %s185
        %v187 = vsel %vm165, %v186, 0.0
        %v188 = vsel %vm166, %v186, 0.0
        %v189 = vsel %vm167, %v186, 0.0
        %v190 = vsel %vm168, %v186, 0.0
        %191 = vst [vmem:[%s131] sm:$0xff] %v187
        %192 = vst [vmem:[%s131 + $0x8] sm:$0xff] %v188
        %193 = vst [vmem:[%s131 + $0x10] sm:$0xff] %v189
        %194 = vst [vmem:[%s131 + $0x18] sm:$0xff] %v190
        %s195 = sand.u32 %s64, 1
        %s196 = scalar_lea.sflag [#allocation5], %s195
        %s197 = sand.u32 %s64, 1
        %s198 = smul.addr %s197, 32
        %s199 = scalar_lea.vmem [#allocation6], %s198
        // Predicated region
        $region33: #{tpu_custom_call.1} parent=23 // pred_check
          %p200 = pneg %p74
        $region34: #{tpu_custom_call.1} parent=23 // pred_check_branch
          %202 = sbr.rel (%p200) target = $region36
        $region35: #{tpu_custom_call.1} parent=23 // pred_region
          %204 = vsyncadd %s196, 0
          %s205 = smul.addr %s20, 4
          %s206 = smul.addr %s21, 4
          %s207 = sadd.s32 %s205, %s206
          %s208 = smul.addr %s207, 8
          %s209 = scalar_lea.hbm %s1, %s208
          %s211 = sshll.u32 %s199, 4
          %s212 = int_to_ptr.vmem [resolvable:$true] %s211
          %s213 = sshll.u32 %s209, 4
          %s214 = int_to_ptr.hbm [resolvable:$true] %s213
          %216 = dma.vmem_to_hbm [thread:$0]  %s212, 512, %s214, %s196
        $region36: #{tpu_custom_call.1} parent=23 // pred_fallthru
          _
      $region24: #{tpu_custom_call.1} parent=5 // pred_fallthru
        _
      %p217 = scmp.le.s32.totalorder 2, %s11
      // Predicated region
      $region37: #{tpu_custom_call.1} parent=5 // pred_check
        %p218 = pneg %p217
      $region38: #{tpu_custom_call.1} parent=5 // pred_check_branch
        %220 = sbr.rel (%p218) target = $region40
      $region39: #{tpu_custom_call.1} parent=5 // pred_region
        %s221 = ssub.s32 %s11, 2
        // Predicated region
        $region41: #{tpu_custom_call.1} parent=39 // pred_check
          %p222 = pneg %p80
        $region42: #{tpu_custom_call.1} parent=39 // pred_check_branch
          %224 = sbr.rel (%p222) target = $region44
        $region43: #{tpu_custom_call.1} parent=39 // pred_region
          %s225 = sand.u32 %s65, 1
          %s226 = scalar_lea.sflag [#allocation5], %s225
          %s227 = sand.u32 %s65, 1
          %s228 = smul.addr %s227, 32
          %s229 = scalar_lea.vmem [#allocation6], %s228
          %231 = dma.done %s226, 512
        $region44: #{tpu_custom_call.1} parent=39 // pred_fallthru
          _
      $region40: #{tpu_custom_call.1} parent=5 // pred_fallthru
        _
    $region6: #{tpu_custom_call.1} parent=1 // loop_footer
      %s15 = sadd.s32 1, %s11
    $region7: #{tpu_custom_call.1} parent=1 // loop_footer_branch
      %10 = sbr.rel target = $region3
    $region8: #{tpu_custom_call.1} parent=1 // loop_exit
      _
    %232 = vsyncpa [#allocation4], 1
    %s233 = scalar_lea.sflag [#allocation4], 1
    %234 = vsyncpa %s233, 1
    %235 = vsyncpa [#allocation5], 1
    %s236 = scalar_lea.sflag [#allocation5], 1
    %237 = vsyncpa %s236, 1

</llo_original>
